<compile_context>
chip_gen: v5e
topology: v5e:2x2
jax: 0.10.0
libtpu: 0.0.40
codegen_flags: <defaults>
</compile_context>

<pallas_src>
import jax
import jax.numpy as jnp
from jax.experimental import pallas as pl
from jax.experimental.pallas import tpu as pltpu

# Synthetic hyperparameters (small, consistent with the module)
N_CLASS = 12
EMB_SIZE = 8
N_HIDDEN = 16
SEQ_LEN = 8
BATCH = N_HIDDEN   # MyLSTM's h/c init of shape [H, H] forces batch == n_hidden
LANE = 128         # TPU lane width; output class dim is padded to this


def lstm_kernel(xs_ref, wxf_ref, whf_ref, bf_ref, wo_ref, bo_ref, out_ref):
    T, B, _ = xs_ref.shape
    H = whf_ref.shape[0]

    # Invariant operands: load once, hoist the bias broadcast out of the loop
    # (JAX does not CSE broadcast_in_dim inside the unrolled trace).
    wx = wxf_ref[...]                                     # [E, 4H]
    wh = whf_ref[...]                                     # [H, 4H]
    bias = jnp.broadcast_to(bf_ref[...], (B, 4 * H))      # bx + bh combined

    h = jnp.zeros((B, H), jnp.float32)
    c = jnp.zeros((B, H), jnp.float32)

    # T is tiny and static: fully unrolled recurrence with static slab loads.
    for t in range(T):
        x = xs_ref[t]                                     # [B, E]
        gates = (jnp.dot(x, wx, preferred_element_type=jnp.float32)
                 + jnp.dot(h, wh, preferred_element_type=jnp.float32)
                 + bias)                                  # [B, 4H]  (i|f|g|o)
        it = jax.nn.sigmoid(gates[:, 0 * H:1 * H])
        ft = jax.nn.sigmoid(gates[:, 1 * H:2 * H])
        gt = jnp.tanh(gates[:, 2 * H:3 * H])
        ot = jax.nn.sigmoid(gates[:, 3 * H:4 * H])
        c = ft * c + it * gt
        h = ot * jnp.tanh(c)

    # Lane-dense (padded to 128) final projection + bias; single unmasked store.
    out_ref[...] = (jnp.dot(h, wo_ref[...], preferred_element_type=jnp.float32)
                    + jnp.broadcast_to(bo_ref[...], out_ref.shape))


def text_lstm_forward(tokens, params):
    emb_table, wx, bx, wh, bh, w_out, b_out = params
    emb = emb_table[tokens]                 # [B, T, E]   (nn.Embedding)
    xs = jnp.transpose(emb, (1, 0, 2))      # [T, B, E]   (X.transpose(0, 1))
    T, B, E = xs.shape
    H = wh.shape[-1]
    C = w_out.shape[-1]
    if B != H:
        raise ValueError(
            "MyLSTM initializes h/c as zeros([n_hidden, n_hidden]); the forward "
            f"pass only type-checks when batch == n_hidden (got B={B}, H={H}).")

    # One-time gate fusion (plain JAX, outside the kernel):
    #   per-gate [4, in, H] (i,f,g,o) -> fused [in, 4H]; combined bias [1, 4H].
    wx_f = jnp.transpose(wx, (1, 0, 2)).reshape(E, 4 * H)
    wh_f = jnp.transpose(wh, (1, 0, 2)).reshape(H, 4 * H)
    b_f = jnp.transpose(bx + bh, (1, 0, 2)).reshape(1, 4 * H)

    # Lane-dense output projection: pad class dim C -> 128 with zeros.
    wo_pad = jnp.zeros((H, LANE), jnp.float32).at[:, :C].set(w_out)
    bo_pad = jnp.zeros((1, LANE), jnp.float32).at[:, :C].set(b_out)

    out_pad = pl.pallas_call(
        lstm_kernel,
        out_shape=jax.ShapeDtypeStruct((B, LANE), jnp.float32),
        in_specs=[pl.BlockSpec(memory_space=pltpu.MemorySpace.VMEM)
                  for _ in range(6)],
        out_specs=pl.BlockSpec(memory_space=pltpu.MemorySpace.VMEM),
    )(xs, wx_f, wh_f, b_f, wo_pad, bo_pad)

    return out_pad[:, :C]


def init_params(key):
    ks = jax.random.split(key, 6)
    emb_table = jax.random.normal(ks[0], (N_CLASS, EMB_SIZE), jnp.float32)

    def uni(k, shape, fan_in):
        bound = 1.0 / jnp.sqrt(fan_in)
        return jax.random.uniform(k, shape, jnp.float32, -bound, bound)

    # stacked (i, f, g, o) gate params; weights stored [in, out]
    wx = uni(ks[1], (4, EMB_SIZE, N_HIDDEN), EMB_SIZE)
    bx = uni(ks[2], (4, 1, N_HIDDEN), EMB_SIZE)
    wh = uni(ks[3], (4, N_HIDDEN, N_HIDDEN), N_HIDDEN)
    bh = uni(ks[4], (4, 1, N_HIDDEN), N_HIDDEN)
    w_out = uni(ks[5], (N_HIDDEN, N_CLASS), N_HIDDEN)
    b_out = jnp.ones((1, N_CLASS), jnp.float32)   # nn.Parameter(torch.ones([n_class]))
    return (emb_table, wx, bx, wh, bh, w_out, b_out)


def reference_forward(tokens, params):
    emb_table, wx, bx, wh, bh, w_out, b_out = params
    xs = jnp.transpose(emb_table[tokens], (1, 0, 2))
    h = jnp.zeros((N_HIDDEN, N_HIDDEN), jnp.float32)
    c = jnp.zeros((N_HIDDEN, N_HIDDEN), jnp.float32)
    for t in range(xs.shape[0]):
        x = xs[t]
        it = jax.nn.sigmoid((x @ wx[0] + bx[0]) + (h @ wh[0] + bh[0]))
        ft = jax.nn.sigmoid((x @ wx[1] + bx[1]) + (h @ wh[1] + bh[1]))
        gt = jnp.tanh((x @ wx[2] + bx[2]) + (h @ wh[2] + bh[2]))
        ot = jax.nn.sigmoid((x @ wx[3] + bx[3]) + (h @ wh[3] + bh[3]))
        c = ft * c + it * gt
        h = ot * jnp.tanh(c)
    return h @ w_out + b_out


if __name__ == "__main__":
    key = jax.random.PRNGKey(0)
    pkey, tkey = jax.random.split(key)
    params = init_params(pkey)
    tokens = jax.random.randint(tkey, (BATCH, SEQ_LEN), 0, N_CLASS, dtype=jnp.int32)

    out = jax.block_until_ready(text_lstm_forward(tokens, params))
    ref = jax.block_until_ready(reference_forward(tokens, params))

    assert out.shape == (BATCH, N_CLASS), out.shape
    assert jnp.allclose(out, ref, rtol=1e-5, atol=1e-5), (
        "mismatch vs reference: max abs err = %g" % float(jnp.max(jnp.abs(out - ref))))
    print("KERNEL_OK")
</pallas_src>

<mosaic_0001>
module attributes {stable_mosaic.version = 11 : i64} {
  func.func @lstm_kernel(%arg0: memref<8x16x8xf32, #tpu.memory_space<vmem>>, %arg1: memref<8x64xf32, #tpu.memory_space<vmem>>, %arg2: memref<16x64xf32, #tpu.memory_space<vmem>>, %arg3: memref<1x64xf32, #tpu.memory_space<vmem>>, %arg4: memref<16x128xf32, #tpu.memory_space<vmem>>, %arg5: memref<1x128xf32, #tpu.memory_space<vmem>>, %arg6: memref<16x128xf32, #tpu.memory_space<vmem>>) attributes {dimension_semantics = [], scalar_prefetch = 0 : i64, scratch_operands = 0 : i64, tpu.core_type = #tpu.core_type<tc>} {
    %c0 = arith.constant 0 : index
    %c0_0 = arith.constant 0 : index
    %0 = vector.load %arg1[%c0, %c0_0] : memref<8x64xf32, #tpu.memory_space<vmem>>, vector<8x64xf32>
    %c0_1 = arith.constant 0 : index
    %c0_2 = arith.constant 0 : index
    %1 = vector.load %arg2[%c0_1, %c0_2] : memref<16x64xf32, #tpu.memory_space<vmem>>, vector<16x64xf32>
    %c0_3 = arith.constant 0 : index
    %c0_4 = arith.constant 0 : index
    %2 = vector.load %arg3[%c0_3, %c0_4] : memref<1x64xf32, #tpu.memory_space<vmem>>, vector<1x64xf32>
    %3 = vector.shape_cast %2 : vector<1x64xf32> to vector<1x64xf32>
    %4 = vector.broadcast %3 : vector<1x64xf32> to vector<16x64xf32>
    %cst = arith.constant 0.000000e+00 : f32
    %5 = vector.broadcast %cst : f32 to vector<16x16xf32>
    %cst_5 = arith.constant 0.000000e+00 : f32
    %6 = vector.broadcast %cst_5 : f32 to vector<16x16xf32>
    %c0_6 = arith.constant 0 : index
    %c0_7 = arith.constant 0 : index
    %c0_8 = arith.constant 0 : index
    %7 = vector.load %arg0[%c0_6, %c0_7, %c0_8] : memref<8x16x8xf32, #tpu.memory_space<vmem>>, vector<1x16x8xf32>
    %8 = vector.shape_cast %7 : vector<1x16x8xf32> to vector<16x8xf32>
    %cst_9 = arith.constant dense<0.000000e+00> : vector<16x64xf32>
    %9 = tpu.matmul %8, %0, %cst_9 {dimension_numbers = #tpu.dot_dimension_numbers<[1], [0], [0], [1], [0, 0, 1, 1], [], []>} : vector<16x8xf32>, vector<8x64xf32>, vector<16x64xf32> -> vector<16x64xf32>
    %cst_10 = arith.constant dense<0.000000e+00> : vector<16x64xf32>
    %10 = tpu.matmul %5, %1, %cst_10 {dimension_numbers = #tpu.dot_dimension_numbers<[1], [0], [0], [1], [0, 0, 1, 1], [], []>} : vector<16x16xf32>, vector<16x64xf32>, vector<16x64xf32> -> vector<16x64xf32>
    %11 = arith.addf %9, %10 : vector<16x64xf32>
    %12 = arith.addf %11, %4 : vector<16x64xf32>
    %13 = vector.extract_strided_slice %12 {offsets = [0, 0], sizes = [16, 16], strides = [1, 1]} : vector<16x64xf32> to vector<16x16xf32>
    %14 = arith.negf %13 : vector<16x16xf32>
    %15 = math.exp %14 : vector<16x16xf32>
    %cst_11 = arith.constant 1.000000e+00 : f32
    %16 = vector.broadcast %cst_11 : f32 to vector<16x16xf32>
    %17 = arith.addf %16, %15 : vector<16x16xf32>
    %18 = arith.divf %16, %17 : vector<16x16xf32>
    %19 = vector.extract_strided_slice %12 {offsets = [0, 16], sizes = [16, 16], strides = [1, 1]} : vector<16x64xf32> to vector<16x16xf32>
    %20 = arith.negf %19 : vector<16x16xf32>
    %21 = math.exp %20 : vector<16x16xf32>
    %cst_12 = arith.constant 1.000000e+00 : f32
    %22 = vector.broadcast %cst_12 : f32 to vector<16x16xf32>
    %23 = arith.addf %22, %21 : vector<16x16xf32>
    %24 = arith.divf %22, %23 : vector<16x16xf32>
    %25 = vector.extract_strided_slice %12 {offsets = [0, 32], sizes = [16, 16], strides = [1, 1]} : vector<16x64xf32> to vector<16x16xf32>
    %26 = math.tanh %25 : vector<16x16xf32>
    %27 = vector.extract_strided_slice %12 {offsets = [0, 48], sizes = [16, 16], strides = [1, 1]} : vector<16x64xf32> to vector<16x16xf32>
    %28 = arith.negf %27 : vector<16x16xf32>
    %29 = math.exp %28 : vector<16x16xf32>
    %cst_13 = arith.constant 1.000000e+00 : f32
    %30 = vector.broadcast %cst_13 : f32 to vector<16x16xf32>
    %31 = arith.addf %30, %29 : vector<16x16xf32>
    %32 = arith.divf %30, %31 : vector<16x16xf32>
    %33 = arith.mulf %24, %6 : vector<16x16xf32>
    %34 = arith.mulf %18, %26 : vector<16x16xf32>
    %35 = arith.addf %33, %34 : vector<16x16xf32>
    %36 = math.tanh %35 : vector<16x16xf32>
    %37 = arith.mulf %32, %36 : vector<16x16xf32>
    %c1 = arith.constant 1 : index
    %c0_14 = arith.constant 0 : index
    %c0_15 = arith.constant 0 : index
    %38 = vector.load %arg0[%c1, %c0_14, %c0_15] : memref<8x16x8xf32, #tpu.memory_space<vmem>>, vector<1x16x8xf32>
    %39 = vector.shape_cast %38 : vector<1x16x8xf32> to vector<16x8xf32>
    %cst_16 = arith.constant dense<0.000000e+00> : vector<16x64xf32>
    %40 = tpu.matmul %39, %0, %cst_16 {dimension_numbers = #tpu.dot_dimension_numbers<[1], [0], [0], [1], [0, 0, 1, 1], [], []>} : vector<16x8xf32>, vector<8x64xf32>, vector<16x64xf32> -> vector<16x64xf32>
    %cst_17 = arith.constant dense<0.000000e+00> : vector<16x64xf32>
    %41 = tpu.matmul %37, %1, %cst_17 {dimension_numbers = #tpu.dot_dimension_numbers<[1], [0], [0], [1], [0, 0, 1, 1], [], []>} : vector<16x16xf32>, vector<16x64xf32>, vector<16x64xf32> -> vector<16x64xf32>
    %42 = arith.addf %40, %41 : vector<16x64xf32>
    %43 = arith.addf %42, %4 : vector<16x64xf32>
    %44 = vector.extract_strided_slice %43 {offsets = [0, 0], sizes = [16, 16], strides = [1, 1]} : vector<16x64xf32> to vector<16x16xf32>
    %45 = arith.negf %44 : vector<16x16xf32>
    %46 = math.exp %45 : vector<16x16xf32>
    %cst_18 = arith.constant 1.000000e+00 : f32
    %47 = vector.broadcast %cst_18 : f32 to vector<16x16xf32>
    %48 = arith.addf %47, %46 : vector<16x16xf32>
    %49 = arith.divf %47, %48 : vector<16x16xf32>
    %50 = vector.extract_strided_slice %43 {offsets = [0, 16], sizes = [16, 16], strides = [1, 1]} : vector<16x64xf32> to vector<16x16xf32>
    %51 = arith.negf %50 : vector<16x16xf32>
    %52 = math.exp %51 : vector<16x16xf32>
    %cst_19 = arith.constant 1.000000e+00 : f32
    %53 = vector.broadcast %cst_19 : f32 to vector<16x16xf32>
    %54 = arith.addf %53, %52 : vector<16x16xf32>
    %55 = arith.divf %53, %54 : vector<16x16xf32>
    %56 = vector.extract_strided_slice %43 {offsets = [0, 32], sizes = [16, 16], strides = [1, 1]} : vector<16x64xf32> to vector<16x16xf32>
    %57 = math.tanh %56 : vector<16x16xf32>
    %58 = vector.extract_strided_slice %43 {offsets = [0, 48], sizes = [16, 16], strides = [1, 1]} : vector<16x64xf32> to vector<16x16xf32>
    %59 = arith.negf %58 : vector<16x16xf32>
    %60 = math.exp %59 : vector<16x16xf32>
    %cst_20 = arith.constant 1.000000e+00 : f32
    %61 = vector.broadcast %cst_20 : f32 to vector<16x16xf32>
    %62 = arith.addf %61, %60 : vector<16x16xf32>
    %63 = arith.divf %61, %62 : vector<16x16xf32>
    %64 = arith.mulf %55, %35 : vector<16x16xf32>
    %65 = arith.mulf %49, %57 : vector<16x16xf32>
    %66 = arith.addf %64, %65 : vector<16x16xf32>
    %67 = math.tanh %66 : vector<16x16xf32>
    %68 = arith.mulf %63, %67 : vector<16x16xf32>
    %c2 = arith.constant 2 : index
    %c0_21 = arith.constant 0 : index
    %c0_22 = arith.constant 0 : index
    %69 = vector.load %arg0[%c2, %c0_21, %c0_22] : memref<8x16x8xf32, #tpu.memory_space<vmem>>, vector<1x16x8xf32>
    %70 = vector.shape_cast %69 : vector<1x16x8xf32> to vector<16x8xf32>
    %cst_23 = arith.constant dense<0.000000e+00> : vector<16x64xf32>
    %71 = tpu.matmul %70, %0, %cst_23 {dimension_numbers = #tpu.dot_dimension_numbers<[1], [0], [0], [1], [0, 0, 1, 1], [], []>} : vector<16x8xf32>, vector<8x64xf32>, vector<16x64xf32> -> vector<16x64xf32>
    %cst_24 = arith.constant dense<0.000000e+00> : vector<16x64xf32>
    %72 = tpu.matmul %68, %1, %cst_24 {dimension_numbers = #tpu.dot_dimension_numbers<[1], [0], [0], [1], [0, 0, 1, 1], [], []>} : vector<16x16xf32>, vector<16x64xf32>, vector<16x64xf32> -> vector<16x64xf32>
    %73 = arith.addf %71, %72 : vector<16x64xf32>
    %74 = arith.addf %73, %4 : vector<16x64xf32>
    %75 = vector.extract_strided_slice %74 {offsets = [0, 0], sizes = [16, 16], strides = [1, 1]} : vector<16x64xf32> to vector<16x16xf32>
    %76 = arith.negf %75 : vector<16x16xf32>
    %77 = math.exp %76 : vector<16x16xf32>
    %cst_25 = arith.constant 1.000000e+00 : f32
    %78 = vector.broadcast %cst_25 : f32 to vector<16x16xf32>
    %79 = arith.addf %78, %77 : vector<16x16xf32>
    %80 = arith.divf %78, %79 : vector<16x16xf32>
    %81 = vector.extract_strided_slice %74 {offsets = [0, 16], sizes = [16, 16], strides = [1, 1]} : vector<16x64xf32> to vector<16x16xf32>
    %82 = arith.negf %81 : vector<16x16xf32>
    %83 = math.exp %82 : vector<16x16xf32>
    %cst_26 = arith.constant 1.000000e+00 : f32
    %84 = vector.broadcast %cst_26 : f32 to vector<16x16xf32>
    %85 = arith.addf %84, %83 : vector<16x16xf32>
    %86 = arith.divf %84, %85 : vector<16x16xf32>
    %87 = vector.extract_strided_slice %74 {offsets = [0, 32], sizes = [16, 16], strides = [1, 1]} : vector<16x64xf32> to vector<16x16xf32>
    %88 = math.tanh %87 : vector<16x16xf32>
    %89 = vector.extract_strided_slice %74 {offsets = [0, 48], sizes = [16, 16], strides = [1, 1]} : vector<16x64xf32> to vector<16x16xf32>
    %90 = arith.negf %89 : vector<16x16xf32>
    %91 = math.exp %90 : vector<16x16xf32>
    %cst_27 = arith.constant 1.000000e+00 : f32
    %92 = vector.broadcast %cst_27 : f32 to vector<16x16xf32>
    %93 = arith.addf %92, %91 : vector<16x16xf32>
    %94 = arith.divf %92, %93 : vector<16x16xf32>
    %95 = arith.mulf %86, %66 : vector<16x16xf32>
    %96 = arith.mulf %80, %88 : vector<16x16xf32>
    %97 = arith.addf %95, %96 : vector<16x16xf32>
    %98 = math.tanh %97 : vector<16x16xf32>
    %99 = arith.mulf %94, %98 : vector<16x16xf32>
    %c3 = arith.constant 3 : index
    %c0_28 = arith.constant 0 : index
    %c0_29 = arith.constant 0 : index
    %100 = vector.load %arg0[%c3, %c0_28, %c0_29] : memref<8x16x8xf32, #tpu.memory_space<vmem>>, vector<1x16x8xf32>
    %101 = vector.shape_cast %100 : vector<1x16x8xf32> to vector<16x8xf32>
    %cst_30 = arith.constant dense<0.000000e+00> : vector<16x64xf32>
    %102 = tpu.matmul %101, %0, %cst_30 {dimension_numbers = #tpu.dot_dimension_numbers<[1], [0], [0], [1], [0, 0, 1, 1], [], []>} : vector<16x8xf32>, vector<8x64xf32>, vector<16x64xf32> -> vector<16x64xf32>
    %cst_31 = arith.constant dense<0.000000e+00> : vector<16x64xf32>
    %103 = tpu.matmul %99, %1, %cst_31 {dimension_numbers = #tpu.dot_dimension_numbers<[1], [0], [0], [1], [0, 0, 1, 1], [], []>} : vector<16x16xf32>, vector<16x64xf32>, vector<16x64xf32> -> vector<16x64xf32>
    %104 = arith.addf %102, %103 : vector<16x64xf32>
    %105 = arith.addf %104, %4 : vector<16x64xf32>
    %106 = vector.extract_strided_slice %105 {offsets = [0, 0], sizes = [16, 16], strides = [1, 1]} : vector<16x64xf32> to vector<16x16xf32>
    %107 = arith.negf %106 : vector<16x16xf32>
    %108 = math.exp %107 : vector<16x16xf32>
    %cst_32 = arith.constant 1.000000e+00 : f32
    %109 = vector.broadcast %cst_32 : f32 to vector<16x16xf32>
    %110 = arith.addf %109, %108 : vector<16x16xf32>
    %111 = arith.divf %109, %110 : vector<16x16xf32>
    %112 = vector.extract_strided_slice %105 {offsets = [0, 16], sizes = [16, 16], strides = [1, 1]} : vector<16x64xf32> to vector<16x16xf32>
    %113 = arith.negf %112 : vector<16x16xf32>
    %114 = math.exp %113 : vector<16x16xf32>
    %cst_33 = arith.constant 1.000000e+00 : f32
    %115 = vector.broadcast %cst_33 : f32 to vector<16x16xf32>
    %116 = arith.addf %115, %114 : vector<16x16xf32>
    %117 = arith.divf %115, %116 : vector<16x16xf32>
    %118 = vector.extract_strided_slice %105 {offsets = [0, 32], sizes = [16, 16], strides = [1, 1]} : vector<16x64xf32> to vector<16x16xf32>
    %119 = math.tanh %118 : vector<16x16xf32>
    %120 = vector.extract_strided_slice %105 {offsets = [0, 48], sizes = [16, 16], strides = [1, 1]} : vector<16x64xf32> to vector<16x16xf32>
    %121 = arith.negf %120 : vector<16x16xf32>
    %122 = math.exp %121 : vector<16x16xf32>
    %cst_34 = arith.constant 1.000000e+00 : f32
    %123 = vector.broadcast %cst_34 : f32 to vector<16x16xf32>
    %124 = arith.addf %123, %122 : vector<16x16xf32>
    %125 = arith.divf %123, %124 : vector<16x16xf32>
    %126 = arith.mulf %117, %97 : vector<16x16xf32>
    %127 = arith.mulf %111, %119 : vector<16x16xf32>
    %128 = arith.addf %126, %127 : vector<16x16xf32>
    %129 = math.tanh %128 : vector<16x16xf32>
    %130 = arith.mulf %125, %129 : vector<16x16xf32>
    %c4 = arith.constant 4 : index
    %c0_35 = arith.constant 0 : index
    %c0_36 = arith.constant 0 : index
    %131 = vector.load %arg0[%c4, %c0_35, %c0_36] : memref<8x16x8xf32, #tpu.memory_space<vmem>>, vector<1x16x8xf32>
    %132 = vector.shape_cast %131 : vector<1x16x8xf32> to vector<16x8xf32>
    %cst_37 = arith.constant dense<0.000000e+00> : vector<16x64xf32>
    %133 = tpu.matmul %132, %0, %cst_37 {dimension_numbers = #tpu.dot_dimension_numbers<[1], [0], [0], [1], [0, 0, 1, 1], [], []>} : vector<16x8xf32>, vector<8x64xf32>, vector<16x64xf32> -> vector<16x64xf32>
    %cst_38 = arith.constant dense<0.000000e+00> : vector<16x64xf32>
    %134 = tpu.matmul %130, %1, %cst_38 {dimension_numbers = #tpu.dot_dimension_numbers<[1], [0], [0], [1], [0, 0, 1, 1], [], []>} : vector<16x16xf32>, vector<16x64xf32>, vector<16x64xf32> -> vector<16x64xf32>
    %135 = arith.addf %133, %134 : vector<16x64xf32>
    %136 = arith.addf %135, %4 : vector<16x64xf32>
    %137 = vector.extract_strided_slice %136 {offsets = [0, 0], sizes = [16, 16], strides = [1, 1]} : vector<16x64xf32> to vector<16x16xf32>
    %138 = arith.negf %137 : vector<16x16xf32>
    %139 = math.exp %138 : vector<16x16xf32>
    %cst_39 = arith.constant 1.000000e+00 : f32
    %140 = vector.broadcast %cst_39 : f32 to vector<16x16xf32>
    %141 = arith.addf %140, %139 : vector<16x16xf32>
    %142 = arith.divf %140, %141 : vector<16x16xf32>
    %143 = vector.extract_strided_slice %136 {offsets = [0, 16], sizes = [16, 16], strides = [1, 1]} : vector<16x64xf32> to vector<16x16xf32>
    %144 = arith.negf %143 : vector<16x16xf32>
    %145 = math.exp %144 : vector<16x16xf32>
    %cst_40 = arith.constant 1.000000e+00 : f32
    %146 = vector.broadcast %cst_40 : f32 to vector<16x16xf32>
    %147 = arith.addf %146, %145 : vector<16x16xf32>
    %148 = arith.divf %146, %147 : vector<16x16xf32>
    %149 = vector.extract_strided_slice %136 {offsets = [0, 32], sizes = [16, 16], strides = [1, 1]} : vector<16x64xf32> to vector<16x16xf32>
    %150 = math.tanh %149 : vector<16x16xf32>
    %151 = vector.extract_strided_slice %136 {offsets = [0, 48], sizes = [16, 16], strides = [1, 1]} : vector<16x64xf32> to vector<16x16xf32>
    %152 = arith.negf %151 : vector<16x16xf32>
    %153 = math.exp %152 : vector<16x16xf32>
    %cst_41 = arith.constant 1.000000e+00 : f32
    %154 = vector.broadcast %cst_41 : f32 to vector<16x16xf32>
    %155 = arith.addf %154, %153 : vector<16x16xf32>
    %156 = arith.divf %154, %155 : vector<16x16xf32>
    %157 = arith.mulf %148, %128 : vector<16x16xf32>
    %158 = arith.mulf %142, %150 : vector<16x16xf32>
    %159 = arith.addf %157, %158 : vector<16x16xf32>
    %160 = math.tanh %159 : vector<16x16xf32>
    %161 = arith.mulf %156, %160 : vector<16x16xf32>
    %c5 = arith.constant 5 : index
    %c0_42 = arith.constant 0 : index
    %c0_43 = arith.constant 0 : index
    %162 = vector.load %arg0[%c5, %c0_42, %c0_43] : memref<8x16x8xf32, #tpu.memory_space<vmem>>, vector<1x16x8xf32>
    %163 = vector.shape_cast %162 : vector<1x16x8xf32> to vector<16x8xf32>
    %cst_44 = arith.constant dense<0.000000e+00> : vector<16x64xf32>
    %164 = tpu.matmul %163, %0, %cst_44 {dimension_numbers = #tpu.dot_dimension_numbers<[1], [0], [0], [1], [0, 0, 1, 1], [], []>} : vector<16x8xf32>, vector<8x64xf32>, vector<16x64xf32> -> vector<16x64xf32>
    %cst_45 = arith.constant dense<0.000000e+00> : vector<16x64xf32>
    %165 = tpu.matmul %161, %1, %cst_45 {dimension_numbers = #tpu.dot_dimension_numbers<[1], [0], [0], [1], [0, 0, 1, 1], [], []>} : vector<16x16xf32>, vector<16x64xf32>, vector<16x64xf32> -> vector<16x64xf32>
    %166 = arith.addf %164, %165 : vector<16x64xf32>
    %167 = arith.addf %166, %4 : vector<16x64xf32>
    %168 = vector.extract_strided_slice %167 {offsets = [0, 0], sizes = [16, 16], strides = [1, 1]} : vector<16x64xf32> to vector<16x16xf32>
    %169 = arith.negf %168 : vector<16x16xf32>
    %170 = math.exp %169 : vector<16x16xf32>
    %cst_46 = arith.constant 1.000000e+00 : f32
    %171 = vector.broadcast %cst_46 : f32 to vector<16x16xf32>
    %172 = arith.addf %171, %170 : vector<16x16xf32>
    %173 = arith.divf %171, %172 : vector<16x16xf32>
    %174 = vector.extract_strided_slice %167 {offsets = [0, 16], sizes = [16, 16], strides = [1, 1]} : vector<16x64xf32> to vector<16x16xf32>
    %175 = arith.negf %174 : vector<16x16xf32>
    %176 = math.exp %175 : vector<16x16xf32>
    %cst_47 = arith.constant 1.000000e+00 : f32
    %177 = vector.broadcast %cst_47 : f32 to vector<16x16xf32>
    %178 = arith.addf %177, %176 : vector<16x16xf32>
    %179 = arith.divf %177, %178 : vector<16x16xf32>
    %180 = vector.extract_strided_slice %167 {offsets = [0, 32], sizes = [16, 16], strides = [1, 1]} : vector<16x64xf32> to vector<16x16xf32>
    %181 = math.tanh %180 : vector<16x16xf32>
    %182 = vector.extract_strided_slice %167 {offsets = [0, 48], sizes = [16, 16], strides = [1, 1]} : vector<16x64xf32> to vector<16x16xf32>
    %183 = arith.negf %182 : vector<16x16xf32>
    %184 = math.exp %183 : vector<16x16xf32>
    %cst_48 = arith.constant 1.000000e+00 : f32
    %185 = vector.broadcast %cst_48 : f32 to vector<16x16xf32>
    %186 = arith.addf %185, %184 : vector<16x16xf32>
    %187 = arith.divf %185, %186 : vector<16x16xf32>
    %188 = arith.mulf %179, %159 : vector<16x16xf32>
    %189 = arith.mulf %173, %181 : vector<16x16xf32>
    %190 = arith.addf %188, %189 : vector<16x16xf32>
    %191 = math.tanh %190 : vector<16x16xf32>
    %192 = arith.mulf %187, %191 : vector<16x16xf32>
    %c6 = arith.constant 6 : index
    %c0_49 = arith.constant 0 : index
    %c0_50 = arith.constant 0 : index
    %193 = vector.load %arg0[%c6, %c0_49, %c0_50] : memref<8x16x8xf32, #tpu.memory_space<vmem>>, vector<1x16x8xf32>
    %194 = vector.shape_cast %193 : vector<1x16x8xf32> to vector<16x8xf32>
    %cst_51 = arith.constant dense<0.000000e+00> : vector<16x64xf32>
    %195 = tpu.matmul %194, %0, %cst_51 {dimension_numbers = #tpu.dot_dimension_numbers<[1], [0], [0], [1], [0, 0, 1, 1], [], []>} : vector<16x8xf32>, vector<8x64xf32>, vector<16x64xf32> -> vector<16x64xf32>
    %cst_52 = arith.constant dense<0.000000e+00> : vector<16x64xf32>
    %196 = tpu.matmul %192, %1, %cst_52 {dimension_numbers = #tpu.dot_dimension_numbers<[1], [0], [0], [1], [0, 0, 1, 1], [], []>} : vector<16x16xf32>, vector<16x64xf32>, vector<16x64xf32> -> vector<16x64xf32>
    %197 = arith.addf %195, %196 : vector<16x64xf32>
    %198 = arith.addf %197, %4 : vector<16x64xf32>
    %199 = vector.extract_strided_slice %198 {offsets = [0, 0], sizes = [16, 16], strides = [1, 1]} : vector<16x64xf32> to vector<16x16xf32>
    %200 = arith.negf %199 : vector<16x16xf32>
    %201 = math.exp %200 : vector<16x16xf32>
    %cst_53 = arith.constant 1.000000e+00 : f32
    %202 = vector.broadcast %cst_53 : f32 to vector<16x16xf32>
    %203 = arith.addf %202, %201 : vector<16x16xf32>
    %204 = arith.divf %202, %203 : vector<16x16xf32>
    %205 = vector.extract_strided_slice %198 {offsets = [0, 16], sizes = [16, 16], strides = [1, 1]} : vector<16x64xf32> to vector<16x16xf32>
    %206 = arith.negf %205 : vector<16x16xf32>
    %207 = math.exp %206 : vector<16x16xf32>
    %cst_54 = arith.constant 1.000000e+00 : f32
    %208 = vector.broadcast %cst_54 : f32 to vector<16x16xf32>
    %209 = arith.addf %208, %207 : vector<16x16xf32>
    %210 = arith.divf %208, %209 : vector<16x16xf32>
    %211 = vector.extract_strided_slice %198 {offsets = [0, 32], sizes = [16, 16], strides = [1, 1]} : vector<16x64xf32> to vector<16x16xf32>
    %212 = math.tanh %211 : vector<16x16xf32>
    %213 = vector.extract_strided_slice %198 {offsets = [0, 48], sizes = [16, 16], strides = [1, 1]} : vector<16x64xf32> to vector<16x16xf32>
    %214 = arith.negf %213 : vector<16x16xf32>
    %215 = math.exp %214 : vector<16x16xf32>
    %cst_55 = arith.constant 1.000000e+00 : f32
    %216 = vector.broadcast %cst_55 : f32 to vector<16x16xf32>
    %217 = arith.addf %216, %215 : vector<16x16xf32>
    %218 = arith.divf %216, %217 : vector<16x16xf32>
    %219 = arith.mulf %210, %190 : vector<16x16xf32>
    %220 = arith.mulf %204, %212 : vector<16x16xf32>
    %221 = arith.addf %219, %220 : vector<16x16xf32>
    %222 = math.tanh %221 : vector<16x16xf32>
    %223 = arith.mulf %218, %222 : vector<16x16xf32>
    %c7 = arith.constant 7 : index
    %c0_56 = arith.constant 0 : index
    %c0_57 = arith.constant 0 : index
    %224 = vector.load %arg0[%c7, %c0_56, %c0_57] : memref<8x16x8xf32, #tpu.memory_space<vmem>>, vector<1x16x8xf32>
    %225 = vector.shape_cast %224 : vector<1x16x8xf32> to vector<16x8xf32>
    %cst_58 = arith.constant dense<0.000000e+00> : vector<16x64xf32>
    %226 = tpu.matmul %225, %0, %cst_58 {dimension_numbers = #tpu.dot_dimension_numbers<[1], [0], [0], [1], [0, 0, 1, 1], [], []>} : vector<16x8xf32>, vector<8x64xf32>, vector<16x64xf32> -> vector<16x64xf32>
    %cst_59 = arith.constant dense<0.000000e+00> : vector<16x64xf32>
    %227 = tpu.matmul %223, %1, %cst_59 {dimension_numbers = #tpu.dot_dimension_numbers<[1], [0], [0], [1], [0, 0, 1, 1], [], []>} : vector<16x16xf32>, vector<16x64xf32>, vector<16x64xf32> -> vector<16x64xf32>
    %228 = arith.addf %226, %227 : vector<16x64xf32>
    %229 = arith.addf %228, %4 : vector<16x64xf32>
    %230 = vector.extract_strided_slice %229 {offsets = [0, 0], sizes = [16, 16], strides = [1, 1]} : vector<16x64xf32> to vector<16x16xf32>
    %231 = arith.negf %230 : vector<16x16xf32>
    %232 = math.exp %231 : vector<16x16xf32>
    %cst_60 = arith.constant 1.000000e+00 : f32
    %233 = vector.broadcast %cst_60 : f32 to vector<16x16xf32>
    %234 = arith.addf %233, %232 : vector<16x16xf32>
    %235 = arith.divf %233, %234 : vector<16x16xf32>
    %236 = vector.extract_strided_slice %229 {offsets = [0, 16], sizes = [16, 16], strides = [1, 1]} : vector<16x64xf32> to vector<16x16xf32>
    %237 = arith.negf %236 : vector<16x16xf32>
    %238 = math.exp %237 : vector<16x16xf32>
    %cst_61 = arith.constant 1.000000e+00 : f32
    %239 = vector.broadcast %cst_61 : f32 to vector<16x16xf32>
    %240 = arith.addf %239, %238 : vector<16x16xf32>
    %241 = arith.divf %239, %240 : vector<16x16xf32>
    %242 = vector.extract_strided_slice %229 {offsets = [0, 32], sizes = [16, 16], strides = [1, 1]} : vector<16x64xf32> to vector<16x16xf32>
    %243 = math.tanh %242 : vector<16x16xf32>
    %244 = vector.extract_strided_slice %229 {offsets = [0, 48], sizes = [16, 16], strides = [1, 1]} : vector<16x64xf32> to vector<16x16xf32>
    %245 = arith.negf %244 : vector<16x16xf32>
    %246 = math.exp %245 : vector<16x16xf32>
    %cst_62 = arith.constant 1.000000e+00 : f32
    %247 = vector.broadcast %cst_62 : f32 to vector<16x16xf32>
    %248 = arith.addf %247, %246 : vector<16x16xf32>
    %249 = arith.divf %247, %248 : vector<16x16xf32>
    %250 = arith.mulf %241, %221 : vector<16x16xf32>
    %251 = arith.mulf %235, %243 : vector<16x16xf32>
    %252 = arith.addf %250, %251 : vector<16x16xf32>
    %253 = math.tanh %252 : vector<16x16xf32>
    %254 = arith.mulf %249, %253 : vector<16x16xf32>
    %c0_63 = arith.constant 0 : index
    %c0_64 = arith.constant 0 : index
    %255 = vector.load %arg4[%c0_63, %c0_64] : memref<16x128xf32, #tpu.memory_space<vmem>>, vector<16x128xf32>
    %cst_65 = arith.constant dense<0.000000e+00> : vector<16x128xf32>
    %256 = tpu.matmul %254, %255, %cst_65 {dimension_numbers = #tpu.dot_dimension_numbers<[1], [0], [0], [1], [0, 0, 1, 1], [], []>} : vector<16x16xf32>, vector<16x128xf32>, vector<16x128xf32> -> vector<16x128xf32>
    %c0_66 = arith.constant 0 : index
    %c0_67 = arith.constant 0 : index
    %257 = vector.load %arg5[%c0_66, %c0_67] : memref<1x128xf32, #tpu.memory_space<vmem>>, vector<1x128xf32>
    %258 = vector.shape_cast %257 : vector<1x128xf32> to vector<1x128xf32>
    %259 = vector.broadcast %258 : vector<1x128xf32> to vector<16x128xf32>
    %260 = arith.addf %256, %259 : vector<16x128xf32>
    %c0_68 = arith.constant 0 : index
    %c0_69 = arith.constant 0 : index
    %261 = vector.load %arg6[%c0_68, %c0_69] : memref<16x128xf32, #tpu.memory_space<vmem>>, vector<16x128xf32>
    tpu.vector_store %arg6[%c0_68, %c0_69], %260 {strides = array<i32>} : memref<16x128xf32, #tpu.memory_space<vmem>>, vector<16x128xf32>,
    return
  }
}

</mosaic_0001>

<llo_original>
// kernel: tpu_custom_call.1
$region0: #{tpu_custom_call.1}
  #allocation0 [shape = 'u32[]', space=smem, size = 0x4, offset = 0x4, fixed_abs, tag = 'smem constant byte address 0x4 - core index']
  #allocation1 [shape = 'u32[72,128]{1,0:T(1,128)}', space=vmem, size = 0x9000, scoped, tag = 'internal scratch']
  %s0 = inlined_call_operand.vmem [shape: f32[8,16,8], index: 0, kind: input, shape index: {}]
  %s1 = inlined_call_operand.vmem [shape: f32[8,64], index: 1, kind: input, shape index: {}]
  %s2 = inlined_call_operand.vmem [shape: f32[16,64], index: 2, kind: input, shape index: {}]
  %s3 = inlined_call_operand.vmem [shape: f32[1,64], index: 3, kind: input, shape index: {}]
  %s4 = inlined_call_operand.vmem [shape: f32[16,128], index: 4, kind: input, shape index: {}]
  %s5 = inlined_call_operand.vmem [shape: f32[1,128], index: 5, kind: input, shape index: {}]
  %s6 = inlined_call_operand.hbm [shape: f32[16,128], index: 6, kind: output, shape index: {}]
  %s7 = sld [smem:[#allocation0]]
  $region34: #{tpu_custom_call.1} parent=0
    _
  %s9 = ssub.s32 1, %s7
  %s10 = scalar_select 0, %s9, %s7
  $region1: #{tpu_custom_call.1} parent=0
    #allocation2 [shape = 'u8[8192]{0}', space=vmem, size = 0x2000, scoped, tag = 'output window, operand 0, single buffered']
    #allocation3 [shape = 's32[1]{0}', space=sflag, size = 0x4, scoped, tag = 'scoped memory for tpu_custom_call.1']
    %11 = vsyncpa [#allocation3], 0
    // Predicated region
    $region2: #{tpu_custom_call.1} parent=1 // pred_check
      _
    $region3: #{tpu_custom_call.1} parent=1 // pred_check_branch
      %13 = sbr.rel (0) target = $region5
    $region4: #{tpu_custom_call.1} parent=1 // pred_region
      _
    $region5: #{tpu_custom_call.1} parent=1 // pred_fallthru
      _
    // Predicated region
    $region6: #{tpu_custom_call.1} parent=1 // pred_check
      _
    $region7: #{tpu_custom_call.1} parent=1 // pred_check_branch
      %15 = sbr.rel (0) target = $region9
    $region8: #{tpu_custom_call.1} parent=1 // pred_region
      _
    $region9: #{tpu_custom_call.1} parent=1 // pred_fallthru
      _
    // Predicated region
    $region10: #{tpu_custom_call.1} parent=1 // pred_check
      _
    $region11: #{tpu_custom_call.1} parent=1 // pred_check_branch
      %17 = sbr.rel (0) target = $region13
    $region12: #{tpu_custom_call.1} parent=1 // pred_region
      _
    $region13: #{tpu_custom_call.1} parent=1 // pred_fallthru
      _
    // Predicated region
    $region14: #{tpu_custom_call.1} parent=1 // pred_check
      _
    $region15: #{tpu_custom_call.1} parent=1 // pred_check_branch
      %19 = sbr.rel (0) target = $region17
    $region16: #{tpu_custom_call.1} parent=1 // pred_region
      _
    $region17: #{tpu_custom_call.1} parent=1 // pred_fallthru
      _
    // Predicated region
    $region18: #{tpu_custom_call.1} parent=1 // pred_check
      _
    $region19: #{tpu_custom_call.1} parent=1 // pred_check_branch
      %21 = sbr.rel (0) target = $region21
    $region20: #{tpu_custom_call.1} parent=1 // pred_region
      _
    $region21: #{tpu_custom_call.1} parent=1 // pred_fallthru
      _
    // Predicated region
    $region22: #{tpu_custom_call.1} parent=1 // pred_check
      _
    $region23: #{tpu_custom_call.1} parent=1 // pred_check_branch
      %23 = sbr.rel (0) target = $region25
    $region24: #{tpu_custom_call.1} parent=1 // pred_region
      _
    $region25: #{tpu_custom_call.1} parent=1 // pred_fallthru
      _
    %v24 = vld [vmem:[%s1] sm:$0xff]
    %v25 = vld [vmem:[%s2] sm:$0xff]
    %v26 = vld [vmem:[%s2 + $0x8] sm:$0xff]
    %v27 = vld [vmem:[%s3] sm:$0x1]
    %v29 = vperm.slane %v27, 0
    %v31 = vld [vmem:[%s0] sm:$0xff]
    %v32 = vld [vmem:[%s0 + $0x8] sm:$0xff]
    %vm33 = vcmask 130048
    %v35 = vsel %vm33, 0.0, 0
    %37 = vmatpush.msra.mxu0 0.0
    %38 = vmatpush.msra.mxu0 0.0
    %39 = vmatpush.msra.mxu0 0.0
    %40 = vmatpush.msra.mxu0 0.0
    %41 = vmatpush.msra.mxu0 0.0
    %42 = vmatpush.msra.mxu0 0.0
    %43 = vmatpush.msra.mxu0 0.0
    %44 = vmatpush.msra.mxu0 0.0
    %45 = vmatpush.msra.mxu0 0.0
    %46 = vmatpush.msra.mxu0 0.0
    %47 = vmatpush.msra.mxu0 0.0
    %48 = vmatpush.msra.mxu0 0.0
    %49 = vmatpush.msra.mxu0 0.0
    %50 = vmatpush.msra.mxu0 0.0
    %51 = vmatpush.msra.mxu0 %v26
    %52 = vmatpush.msra.mxu0 %v25
    %53 = vmatmul.f32.gmra.mxu0 %v35
    %v54 = vpop.f32.mrf.mxu0
    %v55 = vadd.f32 0.0, %v54
    %56 = vmatmul.f32.gmra.mxu0 %v35
    %v57 = vpop.f32.mrf.mxu0
    %v58 = vadd.f32 0.0, %v57
    %59 = vdwg.mxu0
    %vm60 = vcmask 64512
    %v62 = vsel %vm60, %v31, 0
    %v65 = vsel %vm60, %v32, 0
    %67 = vmatpush.msra.mxu0 0.0
    %68 = vmatpush.msra.mxu0 0.0
    %69 = vmatpush.msra.mxu0 0.0
    %70 = vmatpush.msra.mxu0 0.0
    %71 = vmatpush.msra.mxu0 0.0
    %72 = vmatpush.msra.mxu0 0.0
    %73 = vmatpush.msra.mxu0 0.0
    %74 = vmatpush.msra.mxu0 0.0
    %75 = vmatpush.msra.mxu0 0.0
    %76 = vmatpush.msra.mxu0 0.0
    %77 = vmatpush.msra.mxu0 0.0
    %78 = vmatpush.msra.mxu0 0.0
    %79 = vmatpush.msra.mxu0 0.0
    %80 = vmatpush.msra.mxu0 0.0
    %81 = vmatpush.msra.mxu0 0.0
    %82 = vmatpush.msra.mxu0 %v24
    %83 = vmatmul.f32.gmra.mxu0 %v62
    %v84 = vpop.f32.mrf.mxu0
    %v85 = vadd.f32 %v55, %v84
    %86 = vmatmul.f32.gmra.mxu0 %v65
    %v87 = vpop.f32.mrf.mxu0
    %v88 = vadd.f32 %v58, %v87
    %89 = vdwg.mxu0
    %v90 = vadd.f32 %v85, %v29
    %v91 = vadd.f32 %v88, %v29
    %v92 = vxor.u32 %v90, 2147483648
    %v93 = vxor.u32 %v91, 2147483648
    %v94 = vmul.f32 %v92, 1.442695
    %v95 = vpow.pop %v94
    %v96 = vmul.f32 %v93, 1.442695
    %v97 = vpow.pop %v96
    %v98 = vadd.f32 %v95, 1.0
    %v99 = vadd.f32 %v97, 1.0
    %v100 = vrcp.pop %v98
    %v101 = vmul.f32 %v98, %v100
    %v102 = vsub.f32 1.0, %v101
    %v103 = vmul.f32 %v100, %v102
    %v104 = vadd.f32 %v100, %v103
    %vm105 = vweird.f32 %v98
    %vm106 = vweird.f32 %v100
    %vm107 = vmor %vm105, %vm106
    %v108 = vsel %vm107, %v100, %v104
    %v109 = vand.u32 2147483647, %v98
    %vm110 = vcmp.eq.f32.partialorder %v109, 8.507059e+37
    %v111 = vand.u32 %v98, 2147483648
    %v112 = vor.u32 1.1754944e-38, %v111
    %v113 = vsel %vm110, %v112, %v108
    %v114 = vmul.f32 1.0, %v113
    %v115 = vrcp.pop %v99
    %v116 = vmul.f32 %v99, %v115
    %v117 = vsub.f32 1.0, %v116
    %v118 = vmul.f32 %v115, %v117
    %v119 = vadd.f32 %v115, %v118
    %vm120 = vweird.f32 %v99
    %vm121 = vweird.f32 %v115
    %vm122 = vmor %vm120, %vm121
    %v123 = vsel %vm122, %v115, %v119
    %v124 = vand.u32 2147483647, %v99
    %vm125 = vcmp.eq.f32.partialorder %v124, 8.507059e+37
    %v126 = vand.u32 %v99, 2147483648
    %v127 = vor.u32 1.1754944e-38, %v126
    %v128 = vsel %vm125, %v127, %v123
    %v129 = vmul.f32 1.0, %v128
    %v130 = vtanh.pop %v90
    %v131 = vtanh.pop %v91
    %v132 = vmul.f32 %v114, 0.0
    %v133 = vmul.f32 %v129, 0.0
    %136 = vrot.lane.b32.xlu0 %v130, 96
    %v137 = vpop.permute.xlu0 %136
    %138 = vrot.lane.b32.xlu0 %v131, 96
    %v139 = vpop.permute.xlu0 %138
    %v142 = vmul.f32 %v114, %v137
    %v143 = vmul.f32 %v129, %v139
    %146 = vrot.lane.b32.xlu0 %v142, 16
    %v147 = vpop.permute.xlu0 %146
    %148 = vrot.lane.b32.xlu0 %v143, 16
    %v149 = vpop.permute.xlu0 %148
    %v152 = vadd.f32 %v132, %v147
    %v153 = vadd.f32 %v133, %v149
    %v154 = vtanh.pop %v152
    %v155 = vtanh.pop %v153
    %158 = vrot.lane.b32.xlu0 %v154, 32
    %v159 = vpop.permute.xlu0 %158
    %160 = vrot.lane.b32.xlu0 %v155, 32
    %v161 = vpop.permute.xlu0 %160
    %v164 = vmul.f32 %v114, %v159
    %v165 = vmul.f32 %v129, %v161
    %s166 = scalar_lea.vmem %s0, 16
    %v167 = vld [vmem:[%s166] sm:$0xff]
    %v168 = vld [vmem:[%s166 + $0x8] sm:$0xff]
    %171 = vrot.lane.b32.xlu0 %v164, 80
    %v172 = vpop.permute.xlu0 %171
    %173 = vrot.lane.b32.xlu0 %v165, 80
    %v174 = vpop.permute.xlu0 %173
    %v175 = vsel %vm33, %v172, 0
    %v177 = vsel %vm33, %v174, 0
    %179 = vmatpush.msra.mxu0 0.0
    %180 = vmatpush.msra.mxu0 0.0
    %181 = vmatpush.msra.mxu0 0.0
    %182 = vmatpush.msra.mxu0 0.0
    %183 = vmatpush.msra.mxu0 0.0
    %184 = vmatpush.msra.mxu0 0.0
    %185 = vmatpush.msra.mxu0 0.0
    %186 = vmatpush.msra.mxu0 0.0
    %187 = vmatpush.msra.mxu0 0.0
    %188 = vmatpush.msra.mxu0 0.0
    %189 = vmatpush.msra.mxu0 0.0
    %190 = vmatpush.msra.mxu0 0.0
    %191 = vmatpush.msra.mxu0 0.0
    %192 = vmatpush.msra.mxu0 0.0
    %193 = vmatpush.msra.mxu0 %v26
    %194 = vmatpush.msra.mxu0 %v25
    %195 = vmatmul.f32.gmra.mxu0 %v175
    %v196 = vpop.f32.mrf.mxu0
    %v197 = vadd.f32 0.0, %v196
    %198 = vmatmul.f32.gmra.mxu0 %v177
    %v199 = vpop.f32.mrf.mxu0
    %v200 = vadd.f32 0.0, %v199
    %201 = vdwg.mxu0
    %v203 = vsel %vm60, %v167, 0
    %v206 = vsel %vm60, %v168, 0
    %208 = vmatpush.msra.mxu0 0.0
    %209 = vmatpush.msra.mxu0 0.0
    %210 = vmatpush.msra.mxu0 0.0
    %211 = vmatpush.msra.mxu0 0.0
    %212 = vmatpush.msra.mxu0 0.0
    %213 = vmatpush.msra.mxu0 0.0
    %214 = vmatpush.msra.mxu0 0.0
    %215 = vmatpush.msra.mxu0 0.0
    %216 = vmatpush.msra.mxu0 0.0
    %217 = vmatpush.msra.mxu0 0.0
    %218 = vmatpush.msra.mxu0 0.0
    %219 = vmatpush.msra.mxu0 0.0
    %220 = vmatpush.msra.mxu0 0.0
    %221 = vmatpush.msra.mxu0 0.0
    %222 = vmatpush.msra.mxu0 0.0
    %223 = vmatpush.msra.mxu0 %v24
    %224 = vmatmul.f32.gmra.mxu0 %v203
    %v225 = vpop.f32.mrf.mxu0
    %v226 = vadd.f32 %v197, %v225
    %227 = vmatmul.f32.gmra.mxu0 %v206
    %v228 = vpop.f32.mrf.mxu0
    %v229 = vadd.f32 %v200, %v228
    %230 = vdwg.mxu0
    %v231 = vadd.f32 %v226, %v29
    %v232 = vadd.f32 %v229, %v29
    %v233 = vxor.u32 %v231, 2147483648
    %v234 = vxor.u32 %v232, 2147483648
    %v235 = vmul.f32 %v233, 1.442695
    %v236 = vpow.pop %v235
    %v237 = vmul.f32 %v234, 1.442695
    %v238 = vpow.pop %v237
    %v239 = vadd.f32 %v236, 1.0
    %v240 = vadd.f32 %v238, 1.0
    %v241 = vrcp.pop %v239
    %v242 = vmul.f32 %v239, %v241
    %v243 = vsub.f32 1.0, %v242
    %v244 = vmul.f32 %v241, %v243
    %v245 = vadd.f32 %v241, %v244
    %vm246 = vweird.f32 %v239
    %vm247 = vweird.f32 %v241
    %vm248 = vmor %vm246, %vm247
    %v249 = vsel %vm248, %v241, %v245
    %v250 = vand.u32 2147483647, %v239
    %vm251 = vcmp.eq.f32.partialorder %v250, 8.507059e+37
    %v252 = vand.u32 %v239, 2147483648
    %v253 = vor.u32 1.1754944e-38, %v252
    %v254 = vsel %vm251, %v253, %v249
    %v255 = vmul.f32 1.0, %v254
    %v256 = vrcp.pop %v240
    %v257 = vmul.f32 %v240, %v256
    %v258 = vsub.f32 1.0, %v257
    %v259 = vmul.f32 %v256, %v258
    %v260 = vadd.f32 %v256, %v259
    %vm261 = vweird.f32 %v240
    %vm262 = vweird.f32 %v256
    %vm263 = vmor %vm261, %vm262
    %v264 = vsel %vm263, %v256, %v260
    %v265 = vand.u32 2147483647, %v240
    %vm266 = vcmp.eq.f32.partialorder %v265, 8.507059e+37
    %v267 = vand.u32 %v240, 2147483648
    %v268 = vor.u32 1.1754944e-38, %v267
    %v269 = vsel %vm266, %v268, %v264
    %v270 = vmul.f32 1.0, %v269
    %v271 = vtanh.pop %v231
    %v272 = vtanh.pop %v232
    %v273 = vmul.f32 %v255, %v152
    %v274 = vmul.f32 %v270, %v153
    %277 = vrot.lane.b32.xlu0 %v271, 96
    %v278 = vpop.permute.xlu0 %277
    %279 = vrot.lane.b32.xlu0 %v272, 96
    %v280 = vpop.permute.xlu0 %279
    %v283 = vmul.f32 %v255, %v278
    %v284 = vmul.f32 %v270, %v280
    %287 = vrot.lane.b32.xlu0 %v283, 16
    %v288 = vpop.permute.xlu0 %287
    %289 = vrot.lane.b32.xlu0 %v284, 16
    %v290 = vpop.permute.xlu0 %289
    %v293 = vadd.f32 %v273, %v288
    %v294 = vadd.f32 %v274, %v290
    %v295 = vtanh.pop %v293
    %v296 = vtanh.pop %v294
    %299 = vrot.lane.b32.xlu0 %v295, 32
    %v300 = vpop.permute.xlu0 %299
    %301 = vrot.lane.b32.xlu0 %v296, 32
    %v302 = vpop.permute.xlu0 %301
    %v305 = vmul.f32 %v255, %v300
    %v306 = vmul.f32 %v270, %v302
    %s307 = scalar_lea.vmem %s0, 32
    %v308 = vld [vmem:[%s307] sm:$0xff]
    %v309 = vld [vmem:[%s307 + $0x8] sm:$0xff]
    %312 = vrot.lane.b32.xlu0 %v305, 80
    %v313 = vpop.permute.xlu0 %312
    %314 = vrot.lane.b32.xlu0 %v306, 80
    %v315 = vpop.permute.xlu0 %314
    %v316 = vsel %vm33, %v313, 0
    %v318 = vsel %vm33, %v315, 0
    %320 = vmatpush.msra.mxu0 0.0
    %321 = vmatpush.msra.mxu0 0.0
    %322 = vmatpush.msra.mxu0 0.0
    %323 = vmatpush.msra.mxu0 0.0
    %324 = vmatpush.msra.mxu0 0.0
    %325 = vmatpush.msra.mxu0 0.0
    %326 = vmatpush.msra.mxu0 0.0
    %327 = vmatpush.msra.mxu0 0.0
    %328 = vmatpush.msra.mxu0 0.0
    %329 = vmatpush.msra.mxu0 0.0
    %330 = vmatpush.msra.mxu0 0.0
    %331 = vmatpush.msra.mxu0 0.0
    %332 = vmatpush.msra.mxu0 0.0
    %333 = vmatpush.msra.mxu0 0.0
    %334 = vmatpush.msra.mxu0 %v26
    %335 = vmatpush.msra.mxu0 %v25
    %336 = vmatmul.f32.gmra.mxu0 %v316
    %v337 = vpop.f32.mrf.mxu0
    %v338 = vadd.f32 0.0, %v337
    %339 = vmatmul.f32.gmra.mxu0 %v318
    %v340 = vpop.f32.mrf.mxu0
    %v341 = vadd.f32 0.0, %v340
    %342 = vdwg.mxu0
    %v344 = vsel %vm60, %v308, 0
    %v347 = vsel %vm60, %v309, 0
    %349 = vmatpush.msra.mxu0 0.0
    %350 = vmatpush.msra.mxu0 0.0
    %351 = vmatpush.msra.mxu0 0.0
    %352 = vmatpush.msra.mxu0 0.0
    %353 = vmatpush.msra.mxu0 0.0
    %354 = vmatpush.msra.mxu0 0.0
    %355 = vmatpush.msra.mxu0 0.0
    %356 = vmatpush.msra.mxu0 0.0
    %357 = vmatpush.msra.mxu0 0.0
    %358 = vmatpush.msra.mxu0 0.0
    %359 = vmatpush.msra.mxu0 0.0
    %360 = vmatpush.msra.mxu0 0.0
    %361 = vmatpush.msra.mxu0 0.0
    %362 = vmatpush.msra.mxu0 0.0
    %363 = vmatpush.msra.mxu0 0.0
    %364 = vmatpush.msra.mxu0 %v24
    %365 = vmatmul.f32.gmra.mxu0 %v344
    %v366 = vpop.f32.mrf.mxu0
    %v367 = vadd.f32 %v338, %v366
    %368 = vmatmul.f32.gmra.mxu0 %v347
    %v369 = vpop.f32.mrf.mxu0
    %v370 = vadd.f32 %v341, %v369
    %371 = vdwg.mxu0
    %v372 = vadd.f32 %v367, %v29
    %v373 = vadd.f32 %v370, %v29
    %v374 = vxor.u32 %v372, 2147483648
    %v375 = vxor.u32 %v373, 2147483648
    %v376 = vmul.f32 %v374, 1.442695
    %v377 = vpow.pop %v376
    %v378 = vmul.f32 %v375, 1.442695
    %v379 = vpow.pop %v378
    %v380 = vadd.f32 %v377, 1.0
    %v381 = vadd.f32 %v379, 1.0
    %v382 = vrcp.pop %v380
    %v383 = vmul.f32 %v380, %v382
    %v384 = vsub.f32 1.0, %v383
    %v385 = vmul.f32 %v382, %v384
    %v386 = vadd.f32 %v382, %v385
    %vm387 = vweird.f32 %v380
    %vm388 = vweird.f32 %v382
    %vm389 = vmor %vm387, %vm388
    %v390 = vsel %vm389, %v382, %v386
    %v391 = vand.u32 2147483647, %v380
    %vm392 = vcmp.eq.f32.partialorder %v391, 8.507059e+37
    %v393 = vand.u32 %v380, 2147483648
    %v394 = vor.u32 1.1754944e-38, %v393
    %v395 = vsel %vm392, %v394, %v390
    %v396 = vmul.f32 1.0, %v395
    %v397 = vrcp.pop %v381
    %v398 = vmul.f32 %v381, %v397
    %v399 = vsub.f32 1.0, %v398
    %v400 = vmul.f32 %v397, %v399
    %v401 = vadd.f32 %v397, %v400
    %vm402 = vweird.f32 %v381
    %vm403 = vweird.f32 %v397
    %vm404 = vmor %vm402, %vm403
    %v405 = vsel %vm404, %v397, %v401
    %v406 = vand.u32 2147483647, %v381
    %vm407 = vcmp.eq.f32.partialorder %v406, 8.507059e+37
    %v408 = vand.u32 %v381, 2147483648
    %v409 = vor.u32 1.1754944e-38, %v408
    %v410 = vsel %vm407, %v409, %v405
    %v411 = vmul.f32 1.0, %v410
    %v412 = vtanh.pop %v372
    %v413 = vtanh.pop %v373
    %v414 = vmul.f32 %v396, %v293
    %v415 = vmul.f32 %v411, %v294
    %418 = vrot.lane.b32.xlu0 %v412, 96
    %v419 = vpop.permute.xlu0 %418
    %420 = vrot.lane.b32.xlu0 %v413, 96
    %v421 = vpop.permute.xlu0 %420
    %v424 = vmul.f32 %v396, %v419
    %v425 = vmul.f32 %v411, %v421
    %428 = vrot.lane.b32.xlu0 %v424, 16
    %v429 = vpop.permute.xlu0 %428
    %430 = vrot.lane.b32.xlu0 %v425, 16
    %v431 = vpop.permute.xlu0 %430
    %v434 = vadd.f32 %v414, %v429
    %v435 = vadd.f32 %v415, %v431
    %v436 = vtanh.pop %v434
    %v437 = vtanh.pop %v435
    %440 = vrot.lane.b32.xlu0 %v436, 32
    %v441 = vpop.permute.xlu0 %440
    %442 = vrot.lane.b32.xlu0 %v437, 32
    %v443 = vpop.permute.xlu0 %442
    %v446 = vmul.f32 %v396, %v441
    %v447 = vmul.f32 %v411, %v443
    %s448 = scalar_lea.vmem %s0, 48
    %v449 = vld [vmem:[%s448] sm:$0xff]
    %v450 = vld [vmem:[%s448 + $0x8] sm:$0xff]
    %453 = vrot.lane.b32.xlu0 %v446, 80
    %v454 = vpop.permute.xlu0 %453
    %455 = vrot.lane.b32.xlu0 %v447, 80
    %v456 = vpop.permute.xlu0 %455
    %v457 = vsel %vm33, %v454, 0
    %v459 = vsel %vm33, %v456, 0
    %461 = vmatpush.msra.mxu0 0.0
    %462 = vmatpush.msra.mxu0 0.0
    %463 = vmatpush.msra.mxu0 0.0
    %464 = vmatpush.msra.mxu0 0.0
    %465 = vmatpush.msra.mxu0 0.0
    %466 = vmatpush.msra.mxu0 0.0
    %467 = vmatpush.msra.mxu0 0.0
    %468 = vmatpush.msra.mxu0 0.0
    %469 = vmatpush.msra.mxu0 0.0
    %470 = vmatpush.msra.mxu0 0.0
    %471 = vmatpush.msra.mxu0 0.0
    %472 = vmatpush.msra.mxu0 0.0
    %473 = vmatpush.msra.mxu0 0.0
    %474 = vmatpush.msra.mxu0 0.0
    %475 = vmatpush.msra.mxu0 %v26
    %476 = vmatpush.msra.mxu0 %v25
    %477 = vmatmul.f32.gmra.mxu0 %v457
    %v478 = vpop.f32.mrf.mxu0
    %v479 = vadd.f32 0.0, %v478
    %480 = vmatmul.f32.gmra.mxu0 %v459
    %v481 = vpop.f32.mrf.mxu0
    %v482 = vadd.f32 0.0, %v481
    %483 = vdwg.mxu0
    %v485 = vsel %vm60, %v449, 0
    %v488 = vsel %vm60, %v450, 0
    %490 = vmatpush.msra.mxu0 0.0
    %491 = vmatpush.msra.mxu0 0.0
    %492 = vmatpush.msra.mxu0 0.0
    %493 = vmatpush.msra.mxu0 0.0
    %494 = vmatpush.msra.mxu0 0.0
    %495 = vmatpush.msra.mxu0 0.0
    %496 = vmatpush.msra.mxu0 0.0
    %497 = vmatpush.msra.mxu0 0.0
    %498 = vmatpush.msra.mxu0 0.0
    %499 = vmatpush.msra.mxu0 0.0
    %500 = vmatpush.msra.mxu0 0.0
    %501 = vmatpush.msra.mxu0 0.0
    %502 = vmatpush.msra.mxu0 0.0
    %503 = vmatpush.msra.mxu0 0.0
    %504 = vmatpush.msra.mxu0 0.0
    %505 = vmatpush.msra.mxu0 %v24
    %506 = vmatmul.f32.gmra.mxu0 %v485
    %v507 = vpop.f32.mrf.mxu0
    %v508 = vadd.f32 %v479, %v507
    %509 = vmatmul.f32.gmra.mxu0 %v488
    %v510 = vpop.f32.mrf.mxu0
    %v511 = vadd.f32 %v482, %v510
    %512 = vdwg.mxu0
    %v513 = vadd.f32 %v508, %v29
    %v514 = vadd.f32 %v511, %v29
    %v515 = vxor.u32 %v513, 2147483648
    %v516 = vxor.u32 %v514, 2147483648
    %v517 = vmul.f32 %v515, 1.442695
    %v518 = vpow.pop %v517
    %v519 = vmul.f32 %v516, 1.442695
    %v520 = vpow.pop %v519
    %v521 = vadd.f32 %v518, 1.0
    %v522 = vadd.f32 %v520, 1.0
    %v523 = vrcp.pop %v521
    %v524 = vmul.f32 %v521, %v523
    %v525 = vsub.f32 1.0, %v524
    %v526 = vmul.f32 %v523, %v525
    %v527 = vadd.f32 %v523, %v526
    %vm528 = vweird.f32 %v521
    %vm529 = vweird.f32 %v523
    %vm530 = vmor %vm528, %vm529
    %v531 = vsel %vm530, %v523, %v527
    %v532 = vand.u32 2147483647, %v521
    %vm533 = vcmp.eq.f32.partialorder %v532, 8.507059e+37
    %v534 = vand.u32 %v521, 2147483648
    %v535 = vor.u32 1.1754944e-38, %v534
    %v536 = vsel %vm533, %v535, %v531
    %v537 = vmul.f32 1.0, %v536
    %v538 = vrcp.pop %v522
    %v539 = vmul.f32 %v522, %v538
    %v540 = vsub.f32 1.0, %v539
    %v541 = vmul.f32 %v538, %v540
    %v542 = vadd.f32 %v538, %v541
    %vm543 = vweird.f32 %v522
    %vm544 = vweird.f32 %v538
    %vm545 = vmor %vm543, %vm544
    %v546 = vsel %vm545, %v538, %v542
    %v547 = vand.u32 2147483647, %v522
    %vm548 = vcmp.eq.f32.partialorder %v547, 8.507059e+37
    %v549 = vand.u32 %v522, 2147483648
    %v550 = vor.u32 1.1754944e-38, %v549
    %v551 = vsel %vm548, %v550, %v546
    %v552 = vmul.f32 1.0, %v551
    %v553 = vtanh.pop %v513
    %v554 = vtanh.pop %v514
    %v555 = vmul.f32 %v537, %v434
    %v556 = vmul.f32 %v552, %v435
    %559 = vrot.lane.b32.xlu0 %v553, 96
    %v560 = vpop.permute.xlu0 %559
    %561 = vrot.lane.b32.xlu0 %v554, 96
    %v562 = vpop.permute.xlu0 %561
    %v565 = vmul.f32 %v537, %v560
    %v566 = vmul.f32 %v552, %v562
    %569 = vrot.lane.b32.xlu0 %v565, 16
    %v570 = vpop.permute.xlu0 %569
    %571 = vrot.lane.b32.xlu0 %v566, 16
    %v572 = vpop.permute.xlu0 %571
    %v575 = vadd.f32 %v555, %v570
    %v576 = vadd.f32 %v556, %v572
    %v577 = vtanh.pop %v575
    %v578 = vtanh.pop %v576
    %581 = vrot.lane.b32.xlu0 %v577, 32
    %v582 = vpop.permute.xlu0 %581
    %583 = vrot.lane.b32.xlu0 %v578, 32
    %v584 = vpop.permute.xlu0 %583
    %v587 = vmul.f32 %v537, %v582
    %v588 = vmul.f32 %v552, %v584
    %s589 = scalar_lea.vmem %s0, 64
    %v590 = vld [vmem:[%s589] sm:$0xff]
    %v591 = vld [vmem:[%s589 + $0x8] sm:$0xff]
    %594 = vrot.lane.b32.xlu0 %v587, 80
    %v595 = vpop.permute.xlu0 %594
    %596 = vrot.lane.b32.xlu0 %v588, 80
    %v597 = vpop.permute.xlu0 %596
    %v598 = vsel %vm33, %v595, 0
    %v600 = vsel %vm33, %v597, 0
    %602 = vmatpush.msra.mxu0 0.0
    %603 = vmatpush.msra.mxu0 0.0
    %604 = vmatpush.msra.mxu0 0.0
    %605 = vmatpush.msra.mxu0 0.0
    %606 = vmatpush.msra.mxu0 0.0
    %607 = vmatpush.msra.mxu0 0.0
    %608 = vmatpush.msra.mxu0 0.0
    %609 = vmatpush.msra.mxu0 0.0
    %610 = vmatpush.msra.mxu0 0.0
    %611 = vmatpush.msra.mxu0 0.0
    %612 = vmatpush.msra.mxu0 0.0
    %613 = vmatpush.msra.mxu0 0.0
    %614 = vmatpush.msra.mxu0 0.0
    %615 = vmatpush.msra.mxu0 0.0
    %616 = vmatpush.msra.mxu0 %v26
    %617 = vmatpush.msra.mxu0 %v25
    %618 = vmatmul.f32.gmra.mxu0 %v598
    %v619 = vpop.f32.mrf.mxu0
    %v620 = vadd.f32 0.0, %v619
    %621 = vmatmul.f32.gmra.mxu0 %v600
    %v622 = vpop.f32.mrf.mxu0
    %v623 = vadd.f32 0.0, %v622
    %624 = vdwg.mxu0
    %v626 = vsel %vm60, %v590, 0
    %v629 = vsel %vm60, %v591, 0
    %631 = vmatpush.msra.mxu0 0.0
    %632 = vmatpush.msra.mxu0 0.0
    %633 = vmatpush.msra.mxu0 0.0
    %634 = vmatpush.msra.mxu0 0.0
    %635 = vmatpush.msra.mxu0 0.0
    %636 = vmatpush.msra.mxu0 0.0
    %637 = vmatpush.msra.mxu0 0.0
    %638 = vmatpush.msra.mxu0 0.0
    %639 = vmatpush.msra.mxu0 0.0
    %640 = vmatpush.msra.mxu0 0.0
    %641 = vmatpush.msra.mxu0 0.0
    %642 = vmatpush.msra.mxu0 0.0
    %643 = vmatpush.msra.mxu0 0.0
    %644 = vmatpush.msra.mxu0 0.0
    %645 = vmatpush.msra.mxu0 0.0
    %646 = vmatpush.msra.mxu0 %v24
    %647 = vmatmul.f32.gmra.mxu0 %v626
    %v648 = vpop.f32.mrf.mxu0
    %v649 = vadd.f32 %v620, %v648
    %650 = vmatmul.f32.gmra.mxu0 %v629
    %v651 = vpop.f32.mrf.mxu0
    %v652 = vadd.f32 %v623, %v651
    %653 = vdwg.mxu0
    %v654 = vadd.f32 %v649, %v29
    %v655 = vadd.f32 %v652, %v29
    %v656 = vxor.u32 %v654, 2147483648
    %v657 = vxor.u32 %v655, 2147483648
    %v658 = vmul.f32 %v656, 1.442695
    %v659 = vpow.pop %v658
    %v660 = vmul.f32 %v657, 1.442695
    %v661 = vpow.pop %v660
    %v662 = vadd.f32 %v659, 1.0
    %v663 = vadd.f32 %v661, 1.0
    %v664 = vrcp.pop %v662
    %v665 = vmul.f32 %v662, %v664
    %v666 = vsub.f32 1.0, %v665
    %v667 = vmul.f32 %v664, %v666
    %v668 = vadd.f32 %v664, %v667
    %vm669 = vweird.f32 %v662
    %vm670 = vweird.f32 %v664
    %vm671 = vmor %vm669, %vm670
    %v672 = vsel %vm671, %v664, %v668
    %v673 = vand.u32 2147483647, %v662
    %vm674 = vcmp.eq.f32.partialorder %v673, 8.507059e+37
    %v675 = vand.u32 %v662, 2147483648
    %v676 = vor.u32 1.1754944e-38, %v675
    %v677 = vsel %vm674, %v676, %v672
    %v678 = vmul.f32 1.0, %v677
    %v679 = vrcp.pop %v663
    %v680 = vmul.f32 %v663, %v679
    %v681 = vsub.f32 1.0, %v680
    %v682 = vmul.f32 %v679, %v681
    %v683 = vadd.f32 %v679, %v682
    %vm684 = vweird.f32 %v663
    %vm685 = vweird.f32 %v679
    %vm686 = vmor %vm684, %vm685
    %v687 = vsel %vm686, %v679, %v683
    %v688 = vand.u32 2147483647, %v663
    %vm689 = vcmp.eq.f32.partialorder %v688, 8.507059e+37
    %v690 = vand.u32 %v663, 2147483648
    %v691 = vor.u32 1.1754944e-38, %v690
    %v692 = vsel %vm689, %v691, %v687
    %v693 = vmul.f32 1.0, %v692
    %v694 = vtanh.pop %v654
    %v695 = vtanh.pop %v655
    %v696 = vmul.f32 %v678, %v575
    %v697 = vmul.f32 %v693, %v576
    %700 = vrot.lane.b32.xlu0 %v694, 96
    %v701 = vpop.permute.xlu0 %700
    %702 = vrot.lane.b32.xlu0 %v695, 96
    %v703 = vpop.permute.xlu0 %702
    %v706 = vmul.f32 %v678, %v701
    %v707 = vmul.f32 %v693, %v703
    %710 = vrot.lane.b32.xlu0 %v706, 16
    %v711 = vpop.permute.xlu0 %710
    %712 = vrot.lane.b32.xlu0 %v707, 16
    %v713 = vpop.permute.xlu0 %712
    %v716 = vadd.f32 %v696, %v711
    %v717 = vadd.f32 %v697, %v713
    %v718 = vtanh.pop %v716
    %v719 = vtanh.pop %v717
    %722 = vrot.lane.b32.xlu0 %v718, 32
    %v723 = vpop.permute.xlu0 %722
    %724 = vrot.lane.b32.xlu0 %v719, 32
    %v725 = vpop.permute.xlu0 %724
    %v728 = vmul.f32 %v678, %v723
    %v729 = vmul.f32 %v693, %v725
    %s730 = scalar_lea.vmem %s0, 80
    %v731 = vld [vmem:[%s730] sm:$0xff]
    %v732 = vld [vmem:[%s730 + $0x8] sm:$0xff]
    %735 = vrot.lane.b32.xlu0 %v728, 80
    %v736 = vpop.permute.xlu0 %735
    %737 = vrot.lane.b32.xlu0 %v729, 80
    %v738 = vpop.permute.xlu0 %737
    %v739 = vsel %vm33, %v736, 0
    %v741 = vsel %vm33, %v738, 0
    %743 = vmatpush.msra.mxu0 0.0
    %744 = vmatpush.msra.mxu0 0.0
    %745 = vmatpush.msra.mxu0 0.0
    %746 = vmatpush.msra.mxu0 0.0
    %747 = vmatpush.msra.mxu0 0.0
    %748 = vmatpush.msra.mxu0 0.0
    %749 = vmatpush.msra.mxu0 0.0
    %750 = vmatpush.msra.mxu0 0.0
    %751 = vmatpush.msra.mxu0 0.0
    %752 = vmatpush.msra.mxu0 0.0
    %753 = vmatpush.msra.mxu0 0.0
    %754 = vmatpush.msra.mxu0 0.0
    %755 = vmatpush.msra.mxu0 0.0
    %756 = vmatpush.msra.mxu0 0.0
    %757 = vmatpush.msra.mxu0 %v26
    %758 = vmatpush.msra.mxu0 %v25
    %759 = vmatmul.f32.gmra.mxu0 %v739
    %v760 = vpop.f32.mrf.mxu0
    %v761 = vadd.f32 0.0, %v760
    %762 = vmatmul.f32.gmra.mxu0 %v741
    %v763 = vpop.f32.mrf.mxu0
    %v764 = vadd.f32 0.0, %v763
    %765 = vdwg.mxu0
    %v767 = vsel %vm60, %v731, 0
    %v770 = vsel %vm60, %v732, 0
    %772 = vmatpush.msra.mxu0 0.0
    %773 = vmatpush.msra.mxu0 0.0
    %774 = vmatpush.msra.mxu0 0.0
    %775 = vmatpush.msra.mxu0 0.0
    %776 = vmatpush.msra.mxu0 0.0
    %777 = vmatpush.msra.mxu0 0.0
    %778 = vmatpush.msra.mxu0 0.0
    %779 = vmatpush.msra.mxu0 0.0
    %780 = vmatpush.msra.mxu0 0.0
    %781 = vmatpush.msra.mxu0 0.0
    %782 = vmatpush.msra.mxu0 0.0
    %783 = vmatpush.msra.mxu0 0.0
    %784 = vmatpush.msra.mxu0 0.0
    %785 = vmatpush.msra.mxu0 0.0
    %786 = vmatpush.msra.mxu0 0.0
    %787 = vmatpush.msra.mxu0 %v24
    %788 = vmatmul.f32.gmra.mxu0 %v767
    %v789 = vpop.f32.mrf.mxu0
    %v790 = vadd.f32 %v761, %v789
    %791 = vmatmul.f32.gmra.mxu0 %v770
    %v792 = vpop.f32.mrf.mxu0
    %v793 = vadd.f32 %v764, %v792
    %794 = vdwg.mxu0
    %v795 = vadd.f32 %v790, %v29
    %v796 = vadd.f32 %v793, %v29
    %v797 = vxor.u32 %v795, 2147483648
    %v798 = vxor.u32 %v796, 2147483648
    %v799 = vmul.f32 %v797, 1.442695
    %v800 = vpow.pop %v799
    %v801 = vmul.f32 %v798, 1.442695
    %v802 = vpow.pop %v801
    %v803 = vadd.f32 %v800, 1.0
    %v804 = vadd.f32 %v802, 1.0
    %v805 = vrcp.pop %v803
    %v806 = vmul.f32 %v803, %v805
    %v807 = vsub.f32 1.0, %v806
    %v808 = vmul.f32 %v805, %v807
    %v809 = vadd.f32 %v805, %v808
    %vm810 = vweird.f32 %v803
    %vm811 = vweird.f32 %v805
    %vm812 = vmor %vm810, %vm811
    %v813 = vsel %vm812, %v805, %v809
    %v814 = vand.u32 2147483647, %v803
    %vm815 = vcmp.eq.f32.partialorder %v814, 8.507059e+37
    %v816 = vand.u32 %v803, 2147483648
    %v817 = vor.u32 1.1754944e-38, %v816
    %v818 = vsel %vm815, %v817, %v813
    %v819 = vmul.f32 1.0, %v818
    %v820 = vrcp.pop %v804
    %v821 = vmul.f32 %v804, %v820
    %v822 = vsub.f32 1.0, %v821
    %v823 = vmul.f32 %v820, %v822
    %v824 = vadd.f32 %v820, %v823
    %vm825 = vweird.f32 %v804
    %vm826 = vweird.f32 %v820
    %vm827 = vmor %vm825, %vm826
    %v828 = vsel %vm827, %v820, %v824
    %v829 = vand.u32 2147483647, %v804
    %vm830 = vcmp.eq.f32.partialorder %v829, 8.507059e+37
    %v831 = vand.u32 %v804, 2147483648
    %v832 = vor.u32 1.1754944e-38, %v831
    %v833 = vsel %vm830, %v832, %v828
    %v834 = vmul.f32 1.0, %v833
    %v835 = vtanh.pop %v795
    %v836 = vtanh.pop %v796
    %v837 = vmul.f32 %v819, %v716
    %v838 = vmul.f32 %v834, %v717
    %841 = vrot.lane.b32.xlu0 %v835, 96
    %v842 = vpop.permute.xlu0 %841
    %843 = vrot.lane.b32.xlu0 %v836, 96
    %v844 = vpop.permute.xlu0 %843
    %v847 = vmul.f32 %v819, %v842
    %v848 = vmul.f32 %v834, %v844
    %851 = vrot.lane.b32.xlu0 %v847, 16
    %v852 = vpop.permute.xlu0 %851
    %853 = vrot.lane.b32.xlu0 %v848, 16
    %v854 = vpop.permute.xlu0 %853
    %v857 = vadd.f32 %v837, %v852
    %v858 = vadd.f32 %v838, %v854
    %v859 = vtanh.pop %v857
    %v860 = vtanh.pop %v858
    %863 = vrot.lane.b32.xlu0 %v859, 32
    %v864 = vpop.permute.xlu0 %863
    %865 = vrot.lane.b32.xlu0 %v860, 32
    %v866 = vpop.permute.xlu0 %865
    %v869 = vmul.f32 %v819, %v864
    %v870 = vmul.f32 %v834, %v866
    %s871 = scalar_lea.vmem %s0, 96
    %v872 = vld [vmem:[%s871] sm:$0xff]
    %v873 = vld [vmem:[%s871 + $0x8] sm:$0xff]
    %876 = vrot.lane.b32.xlu0 %v869, 80
    %v877 = vpop.permute.xlu0 %876
    %878 = vrot.lane.b32.xlu0 %v870, 80
    %v879 = vpop.permute.xlu0 %878
    %v880 = vsel %vm33, %v877, 0
    %v882 = vsel %vm33, %v879, 0
    %884 = vmatpush.msra.mxu0 0.0
    %885 = vmatpush.msra.mxu0 0.0
    %886 = vmatpush.msra.mxu0 0.0
    %887 = vmatpush.msra.mxu0 0.0
    %888 = vmatpush.msra.mxu0 0.0
    %889 = vmatpush.msra.mxu0 0.0
    %890 = vmatpush.msra.mxu0 0.0
    %891 = vmatpush.msra.mxu0 0.0
    %892 = vmatpush.msra.mxu0 0.0
    %893 = vmatpush.msra.mxu0 0.0
    %894 = vmatpush.msra.mxu0 0.0
    %895 = vmatpush.msra.mxu0 0.0
    %896 = vmatpush.msra.mxu0 0.0
    %897 = vmatpush.msra.mxu0 0.0
    %898 = vmatpush.msra.mxu0 %v26
    %899 = vmatpush.msra.mxu0 %v25
    %900 = vmatmul.f32.gmra.mxu0 %v880
    %v901 = vpop.f32.mrf.mxu0
    %v902 = vadd.f32 0.0, %v901
    %903 = vmatmul.f32.gmra.mxu0 %v882
    %v904 = vpop.f32.mrf.mxu0
    %v905 = vadd.f32 0.0, %v904
    %906 = vdwg.mxu0
    %v908 = vsel %vm60, %v872, 0
    %v911 = vsel %vm60, %v873, 0
    %913 = vmatpush.msra.mxu0 0.0
    %914 = vmatpush.msra.mxu0 0.0
    %915 = vmatpush.msra.mxu0 0.0
    %916 = vmatpush.msra.mxu0 0.0
    %917 = vmatpush.msra.mxu0 0.0
    %918 = vmatpush.msra.mxu0 0.0
    %919 = vmatpush.msra.mxu0 0.0
    %920 = vmatpush.msra.mxu0 0.0
    %921 = vmatpush.msra.mxu0 0.0
    %922 = vmatpush.msra.mxu0 0.0
    %923 = vmatpush.msra.mxu0 0.0
    %924 = vmatpush.msra.mxu0 0.0
    %925 = vmatpush.msra.mxu0 0.0
    %926 = vmatpush.msra.mxu0 0.0
    %927 = vmatpush.msra.mxu0 0.0
    %928 = vmatpush.msra.mxu0 %v24
    %929 = vmatmul.f32.gmra.mxu0 %v908
    %v930 = vpop.f32.mrf.mxu0
    %v931 = vadd.f32 %v902, %v930
    %932 = vmatmul.f32.gmra.mxu0 %v911
    %v933 = vpop.f32.mrf.mxu0
    %v934 = vadd.f32 %v905, %v933
    %935 = vdwg.mxu0
    %v936 = vadd.f32 %v931, %v29
    %v937 = vadd.f32 %v934, %v29
    %v938 = vxor.u32 %v936, 2147483648
    %v939 = vxor.u32 %v937, 2147483648
    %v940 = vmul.f32 %v938, 1.442695
    %v941 = vpow.pop %v940
    %v942 = vmul.f32 %v939, 1.442695
    %v943 = vpow.pop %v942
    %v944 = vadd.f32 %v941, 1.0
    %v945 = vadd.f32 %v943, 1.0
    %v946 = vrcp.pop %v944
    %v947 = vmul.f32 %v944, %v946
    %v948 = vsub.f32 1.0, %v947
    %v949 = vmul.f32 %v946, %v948
    %v950 = vadd.f32 %v946, %v949
    %vm951 = vweird.f32 %v944
    %vm952 = vweird.f32 %v946
    %vm953 = vmor %vm951, %vm952
    %v954 = vsel %vm953, %v946, %v950
    %v955 = vand.u32 2147483647, %v944
    %vm956 = vcmp.eq.f32.partialorder %v955, 8.507059e+37
    %v957 = vand.u32 %v944, 2147483648
    %v958 = vor.u32 1.1754944e-38, %v957
    %v959 = vsel %vm956, %v958, %v954
    %v960 = vmul.f32 1.0, %v959
    %v961 = vrcp.pop %v945
    %v962 = vmul.f32 %v945, %v961
    %v963 = vsub.f32 1.0, %v962
    %v964 = vmul.f32 %v961, %v963
    %v965 = vadd.f32 %v961, %v964
    %vm966 = vweird.f32 %v945
    %vm967 = vweird.f32 %v961
    %vm968 = vmor %vm966, %vm967
    %v969 = vsel %vm968, %v961, %v965
    %v970 = vand.u32 2147483647, %v945
    %vm971 = vcmp.eq.f32.partialorder %v970, 8.507059e+37
    %v972 = vand.u32 %v945, 2147483648
    %v973 = vor.u32 1.1754944e-38, %v972
    %v974 = vsel %vm971, %v973, %v969
    %v975 = vmul.f32 1.0, %v974
    %v976 = vtanh.pop %v936
    %v977 = vtanh.pop %v937
    %v978 = vmul.f32 %v960, %v857
    %v979 = vmul.f32 %v975, %v858
    %982 = vrot.lane.b32.xlu0 %v976, 96
    %v983 = vpop.permute.xlu0 %982
    %984 = vrot.lane.b32.xlu0 %v977, 96
    %v985 = vpop.permute.xlu0 %984
    %v988 = vmul.f32 %v960, %v983
    %v989 = vmul.f32 %v975, %v985
    %992 = vrot.lane.b32.xlu0 %v988, 16
    %v993 = vpop.permute.xlu0 %992
    %994 = vrot.lane.b32.xlu0 %v989, 16
    %v995 = vpop.permute.xlu0 %994
    %v998 = vadd.f32 %v978, %v993
    %v999 = vadd.f32 %v979, %v995
    %v1000 = vtanh.pop %v998
    %v1001 = vtanh.pop %v999
    %1004 = vrot.lane.b32.xlu0 %v1000, 32
    %v1005 = vpop.permute.xlu0 %1004
    %1006 = vrot.lane.b32.xlu0 %v1001, 32
    %v1007 = vpop.permute.xlu0 %1006
    %v1010 = vmul.f32 %v960, %v1005
    %v1011 = vmul.f32 %v975, %v1007
    %s1012 = scalar_lea.vmem %s0, 112
    %v1013 = vld [vmem:[%s1012] sm:$0xff]
    %v1014 = vld [vmem:[%s1012 + $0x8] sm:$0xff]
    %1017 = vrot.lane.b32.xlu0 %v1010, 80
    %v1018 = vpop.permute.xlu0 %1017
    %1019 = vrot.lane.b32.xlu0 %v1011, 80
    %v1020 = vpop.permute.xlu0 %1019
    %v1021 = vsel %vm33, %v1018, 0
    %v1023 = vsel %vm33, %v1020, 0
    %1025 = vmatpush.msra.mxu0 0.0
    %1026 = vmatpush.msra.mxu0 0.0
    %1027 = vmatpush.msra.mxu0 0.0
    %1028 = vmatpush.msra.mxu0 0.0
    %1029 = vmatpush.msra.mxu0 0.0
    %1030 = vmatpush.msra.mxu0 0.0
    %1031 = vmatpush.msra.mxu0 0.0
    %1032 = vmatpush.msra.mxu0 0.0
    %1033 = vmatpush.msra.mxu0 0.0
    %1034 = vmatpush.msra.mxu0 0.0
    %1035 = vmatpush.msra.mxu0 0.0
    %1036 = vmatpush.msra.mxu0 0.0
    %1037 = vmatpush.msra.mxu0 0.0
    %1038 = vmatpush.msra.mxu0 0.0
    %1039 = vmatpush.msra.mxu0 %v26
    %1040 = vmatpush.msra.mxu0 %v25
    %1041 = vmatmul.f32.gmra.mxu0 %v1021
    %v1042 = vpop.f32.mrf.mxu0
    %v1043 = vadd.f32 0.0, %v1042
    %1044 = vmatmul.f32.gmra.mxu0 %v1023
    %v1045 = vpop.f32.mrf.mxu0
    %v1046 = vadd.f32 0.0, %v1045
    %1047 = vdwg.mxu0
    %v1049 = vsel %vm60, %v1013, 0
    %v1052 = vsel %vm60, %v1014, 0
    %1054 = vmatpush.msra.mxu0 0.0
    %1055 = vmatpush.msra.mxu0 0.0
    %1056 = vmatpush.msra.mxu0 0.0
    %1057 = vmatpush.msra.mxu0 0.0
    %1058 = vmatpush.msra.mxu0 0.0
    %1059 = vmatpush.msra.mxu0 0.0
    %1060 = vmatpush.msra.mxu0 0.0
    %1061 = vmatpush.msra.mxu0 0.0
    %1062 = vmatpush.msra.mxu0 0.0
    %1063 = vmatpush.msra.mxu0 0.0
    %1064 = vmatpush.msra.mxu0 0.0
    %1065 = vmatpush.msra.mxu0 0.0
    %1066 = vmatpush.msra.mxu0 0.0
    %1067 = vmatpush.msra.mxu0 0.0
    %1068 = vmatpush.msra.mxu0 0.0
    %1069 = vmatpush.msra.mxu0 %v24
    %1070 = vmatmul.f32.gmra.mxu0 %v1049
    %v1071 = vpop.f32.mrf.mxu0
    %v1072 = vadd.f32 %v1043, %v1071
    %1073 = vmatmul.f32.gmra.mxu0 %v1052
    %v1074 = vpop.f32.mrf.mxu0
    %v1075 = vadd.f32 %v1046, %v1074
    %1076 = vdwg.mxu0
    %v1077 = vadd.f32 %v1072, %v29
    %v1078 = vadd.f32 %v1075, %v29
    %v1079 = vxor.u32 %v1077, 2147483648
    %v1080 = vxor.u32 %v1078, 2147483648
    %v1081 = vmul.f32 %v1079, 1.442695
    %v1082 = vpow.pop %v1081
    %v1083 = vmul.f32 %v1080, 1.442695
    %v1084 = vpow.pop %v1083
    %v1085 = vadd.f32 %v1082, 1.0
    %v1086 = vadd.f32 %v1084, 1.0
    %v1087 = vrcp.pop %v1085
    %v1088 = vmul.f32 %v1085, %v1087
    %v1089 = vsub.f32 1.0, %v1088
    %v1090 = vmul.f32 %v1087, %v1089
    %v1091 = vadd.f32 %v1087, %v1090
    %vm1092 = vweird.f32 %v1085
    %vm1093 = vweird.f32 %v1087
    %vm1094 = vmor %vm1092, %vm1093
    %v1095 = vsel %vm1094, %v1087, %v1091
    %v1096 = vand.u32 2147483647, %v1085
    %vm1097 = vcmp.eq.f32.partialorder %v1096, 8.507059e+37
    %v1098 = vand.u32 %v1085, 2147483648
    %v1099 = vor.u32 1.1754944e-38, %v1098
    %v1100 = vsel %vm1097, %v1099, %v1095
    %v1101 = vmul.f32 1.0, %v1100
    %v1102 = vrcp.pop %v1086
    %v1103 = vmul.f32 %v1086, %v1102
    %v1104 = vsub.f32 1.0, %v1103
    %v1105 = vmul.f32 %v1102, %v1104
    %v1106 = vadd.f32 %v1102, %v1105
    %vm1107 = vweird.f32 %v1086
    %vm1108 = vweird.f32 %v1102
    %vm1109 = vmor %vm1107, %vm1108
    %v1110 = vsel %vm1109, %v1102, %v1106
    %v1111 = vand.u32 2147483647, %v1086
    %vm1112 = vcmp.eq.f32.partialorder %v1111, 8.507059e+37
    %v1113 = vand.u32 %v1086, 2147483648
    %v1114 = vor.u32 1.1754944e-38, %v1113
    %v1115 = vsel %vm1112, %v1114, %v1110
    %v1116 = vmul.f32 1.0, %v1115
    %v1117 = vtanh.pop %v1077
    %v1118 = vtanh.pop %v1078
    %v1119 = vmul.f32 %v1101, %v998
    %v1120 = vmul.f32 %v1116, %v999
    %1123 = vrot.lane.b32.xlu0 %v1117, 96
    %v1124 = vpop.permute.xlu0 %1123
    %1125 = vrot.lane.b32.xlu0 %v1118, 96
    %v1126 = vpop.permute.xlu0 %1125
    %v1129 = vmul.f32 %v1101, %v1124
    %v1130 = vmul.f32 %v1116, %v1126
    %1133 = vrot.lane.b32.xlu0 %v1129, 16
    %v1134 = vpop.permute.xlu0 %1133
    %1135 = vrot.lane.b32.xlu0 %v1130, 16
    %v1136 = vpop.permute.xlu0 %1135
    %v1139 = vadd.f32 %v1119, %v1134
    %v1140 = vadd.f32 %v1120, %v1136
    %v1141 = vtanh.pop %v1139
    %v1142 = vtanh.pop %v1140
    %1145 = vrot.lane.b32.xlu0 %v1141, 32
    %v1146 = vpop.permute.xlu0 %1145
    %1147 = vrot.lane.b32.xlu0 %v1142, 32
    %v1148 = vpop.permute.xlu0 %1147
    %v1151 = vmul.f32 %v1101, %v1146
    %v1152 = vmul.f32 %v1116, %v1148
    %v1153 = vld [vmem:[%s4] sm:$0xff]
    %v1154 = vld [vmem:[%s4 + $0x8] sm:$0xff]
    %v1155 = vld [vmem:[%s5] sm:$0x1]
    %v1157 = vperm.slane %v1155, 0
    %1161 = vrot.lane.b32.xlu0 %v1151, 80
    %v1162 = vpop.permute.xlu0 %1161
    %1163 = vrot.lane.b32.xlu0 %v1152, 80
    %v1164 = vpop.permute.xlu0 %1163
    %v1165 = vsel %vm33, %v1162, 0
    %v1167 = vsel %vm33, %v1164, 0
    %1169 = vmatpush.msra.mxu0 0.0
    %1170 = vmatpush.msra.mxu0 0.0
    %1171 = vmatpush.msra.mxu0 0.0
    %1172 = vmatpush.msra.mxu0 0.0
    %1173 = vmatpush.msra.mxu0 0.0
    %1174 = vmatpush.msra.mxu0 0.0
    %1175 = vmatpush.msra.mxu0 0.0
    %1176 = vmatpush.msra.mxu0 0.0
    %1177 = vmatpush.msra.mxu0 0.0
    %1178 = vmatpush.msra.mxu0 0.0
    %1179 = vmatpush.msra.mxu0 0.0
    %1180 = vmatpush.msra.mxu0 0.0
    %1181 = vmatpush.msra.mxu0 0.0
    %1182 = vmatpush.msra.mxu0 0.0
    %1183 = vmatpush.msra.mxu0 %v1154
    %1184 = vmatpush.msra.mxu0 %v1153
    %1185 = vmatmul.f32.gmra.mxu0 %v1165
    %v1186 = vpop.f32.mrf.mxu0
    %v1187 = vadd.f32 %v1157, %v1186
    %1188 = vmatmul.f32.gmra.mxu0 %v1167
    %v1189 = vpop.f32.mrf.mxu0
    %v1190 = vadd.f32 %v1157, %v1189
    %1191 = vdwg.mxu0
    %1192 = vst [vmem:[#allocation2] sm:$0xff] %v1187
    %1193 = vst [vmem:[#allocation2 + $0x8] sm:$0xff] %v1190
    // Predicated region
    $region26: #{tpu_custom_call.1} parent=1 // pred_check
      _
    $region27: #{tpu_custom_call.1} parent=1 // pred_check_branch
      %1195 = sbr.rel (0) target = $region29
    $region28: #{tpu_custom_call.1} parent=1 // pred_region
      %1197 = vsyncadd [#allocation3], 0
      %s1198 = sshll.u32 [#allocation2], 4
      %s1199 = int_to_ptr.vmem [resolvable:$true] %s1198
      %s1200 = sshll.u32 %s6, 4
      %s1201 = int_to_ptr.hbm [resolvable:$true] %s1200
      %1206 = dma.vmem_to_hbm [thread:$0]  %s1199, 256, %s1201, [#allocation3], 128, 128, 8
    $region29: #{tpu_custom_call.1} parent=1 // pred_fallthru
      _
    // Predicated region
    $region30: #{tpu_custom_call.1} parent=1 // pred_check
      _
    $region31: #{tpu_custom_call.1} parent=1 // pred_check_branch
      %1208 = sbr.rel (0) target = $region33
    $region32: #{tpu_custom_call.1} parent=1 // pred_region
      %1210 = dma.done [#allocation3], 256
    $region33: #{tpu_custom_call.1} parent=1 // pred_fallthru
      _
    %1211 = vsyncpa [#allocation3], 1

</llo_original>
